<compile_context>
chip_gen: v5e
topology: v5e:2x2
jax: 0.10.0
libtpu: 0.0.40
codegen_flags: <defaults>
</compile_context>

<pallas_src>
import math

import numpy as np
import jax
import jax.numpy as jnp
from jax import lax
from jax.experimental import pallas as pl
from jax.experimental.pallas import tpu as pltpu

# ---------------- model hyper-parameters (small, consistent with the module) ----
B = 2          # batch
S = 8          # sequence length
D = 32         # d_model ("size" in SublayerConnection / EncoderLayer)
H = 4          # attention heads
DK = D // H    # per-head dim
DFF = 64       # feed-forward hidden dim
EPS = 1e-6
BS = B * S     # flattened token count
NEG_BIAS = -1e30  # additive mask for cross-batch attention entries

# lane-aligned column offsets inside the packed weight slab (all multiples of 128)
W_QKV_OFF, W_O_OFF, W_1_OFF, WPAD = 0, 128, 256, 320


# ---------------- fused encoder-block body (shared by both grid modes) ----------
def _block_body(x, bias, wbig_ref, w2_ref, vec_ref, o_ref):
    T = x.shape[0]                                          # BS (fused) or S (per-batch)

    # One vld of the whole (8,128) vector slab; static slices below are register-level.
    vec = vec_ref[...]
    bqkv = vec[0:1, :3 * D]                                 # (1, 3D)  (scale pre-folded)
    bo   = vec[1:2, :D]
    a1   = vec[2:3, :D]
    b1   = vec[3:4, :D]
    a2   = vec[4:5, :D]
    b2   = vec[5:6, :D]
    c1   = vec[6:7, :DFF]
    c2   = vec[7:8, :D]

    # Lane-aligned static slices of the packed weight slab (no XLU realignment).
    wqkv = wbig_ref[:, W_QKV_OFF:W_QKV_OFF + 3 * D]         # (D, 3D)
    wo   = wbig_ref[:, W_O_OFF:W_O_OFF + D]                 # (D, D)
    w1   = wbig_ref[:, W_1_OFF:W_1_OFF + DFF]               # (D, DFF)

    def layer_norm(v, a, b):
        mean = jnp.mean(v, axis=-1, keepdims=True)
        # PyTorch x.std(dim=-1) -> unbiased (divide by D-1); eps added to the std.
        var = jnp.sum((v - mean) ** 2, axis=-1, keepdims=True) / (D - 1)
        inv = pl.reciprocal(jnp.sqrt(var) + EPS, approx=False)   # per-row, EUP slot
        return a * (v - mean) * inv + b

    # ---- sublayer 0: pre-norm multi-head self-attention + residual ----
    ln1 = layer_norm(x, a1, b1)
    qkv = jnp.dot(ln1, wqkv, preferred_element_type=jnp.float32) + bqkv    # (T, 3D)

    attn = jnp.zeros((T, D), jnp.float32)
    for h in range(H):  # H=4 tiny static unroll; softmax batched over all rows of the tile
        q_h = qkv[:, h * DK:(h + 1) * DK]                   # (T, DK), already scaled
        k_h = qkv[:, D + h * DK:D + (h + 1) * DK]           # (T, DK)
        v_h = qkv[:, 2 * D + h * DK:2 * D + (h + 1) * DK]   # (T, DK)

        # scores = q_h @ k_h^T without an explicit transpose (contract last dims).
        s = lax.dot_general(q_h, k_h, (((1,), (1,)), ((), ())),
                            preferred_element_type=jnp.float32)            # (T, T)
        if bias is not None:                                # fused mode only (block-diag)
            s = s + bias
        m = jnp.max(s, axis=-1, keepdims=True)
        p = jnp.exp(s - m)
        # EUP reciprocal for the softmax denominator (frees the VALU slot).
        p = p * pl.reciprocal(jnp.sum(p, axis=-1, keepdims=True), approx=True)

        ctx = jnp.dot(p, v_h, preferred_element_type=jnp.float32)          # (T, DK)
        # Accumulate straight into the output projection -> no lane concat.
        attn = attn + jnp.dot(ctx, wo[h * DK:(h + 1) * DK, :],
                              preferred_element_type=jnp.float32)          # (T, D)

    x1 = x + attn + bo                                      # residual (SublayerConnection #0)

    # ---- sublayer 1: pre-norm position-wise feed-forward + residual ----
    ln2 = layer_norm(x1, a2, b2)
    hdn = jnp.maximum(jnp.dot(ln2, w1, preferred_element_type=jnp.float32) + c1, 0.0)
    ff = jnp.dot(hdn, w2_ref[...], preferred_element_type=jnp.float32) + c2

    o_ref[...] = x1 + ff                                    # residual (SublayerConnection #1)


def kernel_fused(x_ref, bias_ref, wbig_ref, w2_ref, vec_ref, o_ref):
    # grid=(1,): whole (BS, D) slab, block-diagonal bias keeps attention within sequences.
    _block_body(x_ref[...], bias_ref[...], wbig_ref, w2_ref, vec_ref, o_ref)


def kernel_per_batch(x_ref, wbig_ref, w2_ref, vec_ref, o_ref):
    # grid=(B,): one (S, D) sequence per grid step -> no bias needed.
    _block_body(x_ref[...], None, wbig_ref, w2_ref, vec_ref, o_ref)


# ---------------- parameter packing (one-time algebraic folds + DMA consolidation)
def pack_params(params):
    (wq, bq, wk, bk, wv, bv, wo, bo,
     a1, b1, a2, b2, w1, c1, w2, c2) = params
    scale = 1.0 / math.sqrt(DK)
    # Fold the attention scale into Wq/bq and fuse Q/K/V into one (D, 3D) weight.
    wqkv = jnp.concatenate([wq * scale, wk, wv], axis=1)    # (D, 3D)
    bqkv = jnp.concatenate([bq * scale, bk, bv], axis=1)    # (1, 3D)

    # One (D, 320) weight slab, columns 128-lane aligned per sub-weight.
    wbig = jnp.zeros((D, WPAD), jnp.float32)
    wbig = wbig.at[:, W_QKV_OFF:W_QKV_OFF + 3 * D].set(wqkv)
    wbig = wbig.at[:, W_O_OFF:W_O_OFF + D].set(wo)
    wbig = wbig.at[:, W_1_OFF:W_1_OFF + DFF].set(w1)

    # One (8, 128) slab holding all eight small vectors (row r = vector r, zero padded).
    vecs = jnp.zeros((8, 128), jnp.float32)
    for r, v in enumerate((bqkv, bo, a1, b1, a2, b2, c1, c2)):
        vecs = vecs.at[r, :v.shape[-1]].set(v[0])

    return wbig, w2, vecs


def _block_diag_bias():
    # Precomputed at pack/trace time: tokens attend only within their own sequence.
    tok = np.arange(BS) // S
    return jnp.asarray(np.where(tok[:, None] == tok[None, :], 0.0, NEG_BIAS),
                       dtype=jnp.float32)


_BLOCK_DIAG_BIAS = _block_diag_bias()


def _default_shard_batch():
    # Shard the batch across TensorCores only where there are 2 TCs per chip (v7x).
    try:
        kind = jax.devices()[0].device_kind.lower().replace(" ", "")
        return ("v7" in kind) or ("tpu7" in kind)
    except Exception:
        return False


# ---------------- wrapper: pallas_call plumbing --------------------------------
def encoder_block(x, packed, shard_batch=None):
    if shard_batch is None:
        shard_batch = _default_shard_batch()
    wbig, w2p, vecs = packed
    x2 = x.reshape(BS, D)                                   # flatten tokens (free reshape)

    def const(shape):
        # parameter / replicated block: same tile for every grid step
        return pl.BlockSpec(shape, lambda *_: (0,) * len(shape))

    if shard_batch:
        # v7x: one sequence per grid step, sharded across the 2 TensorCores.
        grid = (B,)
        kernel = kernel_per_batch
        in_specs = [pl.BlockSpec((S, D), lambda b: (b, 0)),
                    const((D, WPAD)), const((DFF, D)), const((8, 128))]
        out_specs = pl.BlockSpec((S, D), lambda b: (b, 0))
        operands = (x2, wbig, w2p, vecs)
        semantics = ("parallel",)
    else:
        # v5e/v6e: single grid step, batched softmax via the block-diagonal bias.
        grid = (1,)
        kernel = kernel_fused
        in_specs = [const((BS, D)), const((BS, BS)),
                    const((D, WPAD)), const((DFF, D)), const((8, 128))]
        out_specs = const((BS, D))
        operands = (x2, _BLOCK_DIAG_BIAS, wbig, w2p, vecs)
        semantics = ("arbitrary",)

    out = pl.pallas_call(
        kernel,
        out_shape=jax.ShapeDtypeStruct((BS, D), jnp.float32),
        grid_spec=pltpu.PrefetchScalarGridSpec(
            num_scalar_prefetch=0,
            grid=grid,
            in_specs=in_specs,
            out_specs=out_specs,
        ),
        compiler_params=pltpu.CompilerParams(dimension_semantics=semantics),
    )(*operands)
    return out.reshape(B, S, D)


# ---------------- pure-JAX reference (unpacked params) -------------------------
def encoder_block_ref(x, params):
    (wq, bq, wk, bk, wv, bv, wo, bo,
     a1, b1, a2, b2, w1, c1, w2, c2) = params

    def ln(v, a, b):
        mean = jnp.mean(v, axis=-1, keepdims=True)
        var = jnp.sum((v - mean) ** 2, axis=-1, keepdims=True) / (D - 1)
        return a * (v - mean) / (jnp.sqrt(var) + EPS) + b

    n1 = ln(x, a1, b1)
    q = n1 @ wq + bq
    k = n1 @ wk + bk
    v = n1 @ wv + bv
    qh = q.reshape(B, S, H, DK).transpose(0, 2, 1, 3)
    kh = k.reshape(B, S, H, DK).transpose(0, 2, 1, 3)
    vh = v.reshape(B, S, H, DK).transpose(0, 2, 1, 3)
    scores = jnp.einsum("bhqd,bhkd->bhqk", qh, kh) / math.sqrt(DK)
    p = jax.nn.softmax(scores, axis=-1)
    o = jnp.einsum("bhqk,bhkd->bhqd", p, vh).transpose(0, 2, 1, 3).reshape(B, S, D)
    x1 = x + (o @ wo + bo)
    n2 = ln(x1, a2, b2)
    ff = jnp.maximum(n2 @ w1 + c1, 0.0) @ w2 + c2
    return x1 + ff


# ---------------- deterministic parameter init + run ---------------------------
def make_params(key):
    ks = jax.random.split(key, 12)
    s = 0.1
    wq = s * jax.random.normal(ks[0], (D, D), jnp.float32)
    wk = s * jax.random.normal(ks[1], (D, D), jnp.float32)
    wv = s * jax.random.normal(ks[2], (D, D), jnp.float32)
    wo = s * jax.random.normal(ks[3], (D, D), jnp.float32)
    bq = s * jax.random.normal(ks[4], (1, D), jnp.float32)
    bk = s * jax.random.normal(ks[5], (1, D), jnp.float32)
    bv = s * jax.random.normal(ks[6], (1, D), jnp.float32)
    bo = s * jax.random.normal(ks[7], (1, D), jnp.float32)
    a1 = jnp.ones((1, D), jnp.float32)
    b1 = jnp.zeros((1, D), jnp.float32)
    a2 = jnp.ones((1, D), jnp.float32)
    b2 = jnp.zeros((1, D), jnp.float32)
    w1 = s * jax.random.normal(ks[8], (D, DFF), jnp.float32)
    c1 = s * jax.random.normal(ks[9], (1, DFF), jnp.float32)
    w2 = s * jax.random.normal(ks[10], (DFF, D), jnp.float32)
    c2 = s * jax.random.normal(ks[11], (1, D), jnp.float32)
    return (wq, bq, wk, bk, wv, bv, wo, bo, a1, b1, a2, b2, w1, c1, w2, c2)


if __name__ == "__main__":
    key = jax.random.PRNGKey(0)
    k_x, k_p = jax.random.split(key)
    x = jax.random.normal(k_x, (B, S, D), jnp.float32)
    params = make_params(k_p)
    packed = pack_params(params)

    ref = encoder_block_ref(x, params)

    # Single-grid-step mode (default on v5e/v6e: one TC, batched softmax via block-diag bias).
    out_fused = jax.block_until_ready(encoder_block(x, packed, shard_batch=False))
    # Batch-sharded mode (default on v7x: grid=(B,), "parallel" across the 2 TensorCores).
    out_shard = jax.block_until_ready(encoder_block(x, packed, shard_batch=True))

    assert out_fused.shape == (B, S, D)
    assert out_shard.shape == (B, S, D)
    # Tolerance relaxed from 1e-4 only because the softmax denominator uses the
    # EUP approximate reciprocal (~bf16-accurate); everything else is f32-exact.
    assert jnp.allclose(out_fused, ref, atol=5e-3, rtol=5e-3), "fused-mode mismatch vs reference"
    assert jnp.allclose(out_shard, ref, atol=5e-3, rtol=5e-3), "sharded-mode mismatch vs reference"

    print("KERNEL_OK")
</pallas_src>

<mosaic_0001>
module attributes {stable_mosaic.version = 11 : i64} {
  func.func @kernel_fused(%arg0: i32, %arg1: memref<16x32xf32, #tpu.memory_space<vmem>>, %arg2: memref<16x16xf32, #tpu.memory_space<vmem>>, %arg3: memref<32x320xf32, #tpu.memory_space<vmem>>, %arg4: memref<64x32xf32, #tpu.memory_space<vmem>>, %arg5: memref<8x128xf32, #tpu.memory_space<vmem>>, %arg6: memref<16x32xf32, #tpu.memory_space<vmem>>) attributes {dimension_semantics = [#tpu.dimension_semantics<arbitrary>], iteration_bounds = array<i64: 1>, scalar_prefetch = 0 : i64, scratch_operands = 0 : i64, tpu.core_type = #tpu.core_type<tc>, window_params = [{pipeline_mode = #tpu.pipeline_mode<synchronous>, transform_indices = @transform_0, window_bounds = array<i64: 16, 32>}, {pipeline_mode = #tpu.pipeline_mode<synchronous>, transform_indices = @transform_1, window_bounds = array<i64: 16, 16>}, {pipeline_mode = #tpu.pipeline_mode<synchronous>, transform_indices = @transform_2, window_bounds = array<i64: 32, 320>}, {pipeline_mode = #tpu.pipeline_mode<synchronous>, transform_indices = @transform_3, window_bounds = array<i64: 64, 32>}, {pipeline_mode = #tpu.pipeline_mode<synchronous>, transform_indices = @transform_4, window_bounds = array<i64: 8, 128>}, {pipeline_mode = #tpu.pipeline_mode<synchronous>, transform_indices = @transform_5, window_bounds = array<i64: 16, 32>}]} {
    %c0 = arith.constant 0 : index
    %c0_0 = arith.constant 0 : index
    %0 = vector.load %arg1[%c0, %c0_0] : memref<16x32xf32, #tpu.memory_space<vmem>>, vector<16x32xf32>
    %c0_1 = arith.constant 0 : index
    %c0_2 = arith.constant 0 : index
    %1 = vector.load %arg2[%c0_1, %c0_2] : memref<16x16xf32, #tpu.memory_space<vmem>>, vector<16x16xf32>
    %c0_3 = arith.constant 0 : index
    %c0_4 = arith.constant 0 : index
    %2 = vector.load %arg5[%c0_3, %c0_4] : memref<8x128xf32, #tpu.memory_space<vmem>>, vector<8x128xf32>
    %3 = vector.extract_strided_slice %2 {offsets = [0, 0], sizes = [1, 96], strides = [1, 1]} : vector<8x128xf32> to vector<1x96xf32>
    %4 = vector.extract_strided_slice %2 {offsets = [1, 0], sizes = [1, 32], strides = [1, 1]} : vector<8x128xf32> to vector<1x32xf32>
    %5 = vector.extract_strided_slice %2 {offsets = [2, 0], sizes = [1, 32], strides = [1, 1]} : vector<8x128xf32> to vector<1x32xf32>
    %6 = vector.extract_strided_slice %2 {offsets = [3, 0], sizes = [1, 32], strides = [1, 1]} : vector<8x128xf32> to vector<1x32xf32>
    %7 = vector.extract_strided_slice %2 {offsets = [4, 0], sizes = [1, 32], strides = [1, 1]} : vector<8x128xf32> to vector<1x32xf32>
    %8 = vector.extract_strided_slice %2 {offsets = [5, 0], sizes = [1, 32], strides = [1, 1]} : vector<8x128xf32> to vector<1x32xf32>
    %9 = vector.extract_strided_slice %2 {offsets = [6, 0], sizes = [1, 64], strides = [1, 1]} : vector<8x128xf32> to vector<1x64xf32>
    %10 = vector.extract_strided_slice %2 {offsets = [7, 0], sizes = [1, 32], strides = [1, 1]} : vector<8x128xf32> to vector<1x32xf32>
    %c0_5 = arith.constant 0 : index
    %c0_6 = arith.constant 0 : index
    %11 = vector.load %arg3[%c0_5, %c0_6] : memref<32x320xf32, #tpu.memory_space<vmem>>, vector<32x96xf32>
    %c0_7 = arith.constant 0 : index
    %c128 = arith.constant 128 : index
    %12 = vector.load %arg3[%c0_7, %c128] : memref<32x320xf32, #tpu.memory_space<vmem>>, vector<32x32xf32>
    %c0_8 = arith.constant 0 : index
    %c256 = arith.constant 256 : index
    %13 = vector.load %arg3[%c0_8, %c256] : memref<32x320xf32, #tpu.memory_space<vmem>>, vector<32x64xf32>
    %cst = arith.constant dense<0.000000e+00> : vector<16xf32>
    %14 = vector.multi_reduction <add>, %0, %cst [1] : vector<16x32xf32> to vector<16xf32>
    %15 = vector.shape_cast %14 : vector<16xf32> to vector<16x1xf32>
    %cst_9 = arith.constant 3.200000e+01 : f32
    %16 = vector.broadcast %cst_9 : f32 to vector<16x1xf32>
    %17 = arith.divf %15, %16 : vector<16x1xf32>
    %18 = vector.broadcast %17 : vector<16x1xf32> to vector<16x32xf32>
    %19 = arith.subf %0, %18 : vector<16x32xf32>
    %20 = arith.mulf %19, %19 : vector<16x32xf32>
    %cst_10 = arith.constant dense<0.000000e+00> : vector<16xf32>
    %21 = vector.multi_reduction <add>, %20, %cst_10 [1] : vector<16x32xf32> to vector<16xf32>
    %22 = vector.shape_cast %21 : vector<16xf32> to vector<16x1xf32>
    %cst_11 = arith.constant 3.100000e+01 : f32
    %23 = vector.broadcast %cst_11 : f32 to vector<16x1xf32>
    %24 = arith.divf %22, %23 : vector<16x1xf32>
    %25 = math.sqrt %24 : vector<16x1xf32>
    %cst_12 = arith.constant 9.99999997E-7 : f32
    %26 = vector.broadcast %cst_12 : f32 to vector<16x1xf32>
    %27 = arith.addf %25, %26 : vector<16x1xf32>
    %28 = tpu.reciprocal %27 : vector<16x1xf32> -> vector<16x1xf32>
    %29 = vector.broadcast %17 : vector<16x1xf32> to vector<16x32xf32>
    %30 = arith.subf %0, %29 : vector<16x32xf32>
    %31 = vector.broadcast %5 : vector<1x32xf32> to vector<16x32xf32>
    %32 = arith.mulf %31, %30 : vector<16x32xf32>
    %33 = vector.broadcast %28 : vector<16x1xf32> to vector<16x32xf32>
    %34 = arith.mulf %32, %33 : vector<16x32xf32>
    %35 = vector.broadcast %6 : vector<1x32xf32> to vector<16x32xf32>
    %36 = arith.addf %34, %35 : vector<16x32xf32>
    %cst_13 = arith.constant dense<0.000000e+00> : vector<16x96xf32>
    %37 = tpu.matmul %36, %11, %cst_13 {dimension_numbers = #tpu.dot_dimension_numbers<[1], [0], [0], [1], [0, 0, 1, 1], [], []>} : vector<16x32xf32>, vector<32x96xf32>, vector<16x96xf32> -> vector<16x96xf32>
    %38 = vector.broadcast %3 : vector<1x96xf32> to vector<16x96xf32>
    %39 = arith.addf %37, %38 : vector<16x96xf32>
    %cst_14 = arith.constant 0.000000e+00 : f32
    %40 = vector.broadcast %cst_14 : f32 to vector<16x32xf32>
    %41 = vector.extract_strided_slice %39 {offsets = [0, 0], sizes = [16, 8], strides = [1, 1]} : vector<16x96xf32> to vector<16x8xf32>
    %42 = vector.extract_strided_slice %39 {offsets = [0, 32], sizes = [16, 8], strides = [1, 1]} : vector<16x96xf32> to vector<16x8xf32>
    %43 = vector.extract_strided_slice %39 {offsets = [0, 64], sizes = [16, 8], strides = [1, 1]} : vector<16x96xf32> to vector<16x8xf32>
    %cst_15 = arith.constant dense<0.000000e+00> : vector<16x16xf32>
    %44 = tpu.matmul %41, %42, %cst_15 {dimension_numbers = #tpu.dot_dimension_numbers<[1], [1], [0], [0], [0, 0, 1, 0], [], []>} : vector<16x8xf32>, vector<16x8xf32>, vector<16x16xf32> -> vector<16x16xf32>
    %45 = arith.addf %44, %1 : vector<16x16xf32>
    %cst_16 = arith.constant dense<0xFF800000> : vector<16xf32>
    %46 = vector.multi_reduction <maximumf>, %45, %cst_16 [1] : vector<16x16xf32> to vector<16xf32>
    %47 = vector.shape_cast %46 : vector<16xf32> to vector<16x1xf32>
    %48 = vector.broadcast %47 : vector<16x1xf32> to vector<16x16xf32>
    %49 = arith.subf %45, %48 : vector<16x16xf32>
    %50 = math.exp %49 : vector<16x16xf32>
    %cst_17 = arith.constant dense<0.000000e+00> : vector<16xf32>
    %51 = vector.multi_reduction <add>, %50, %cst_17 [1] : vector<16x16xf32> to vector<16xf32>
    %52 = vector.shape_cast %51 : vector<16xf32> to vector<16x1xf32>
    %53 = tpu.reciprocal %52 {approx = true} : vector<16x1xf32> -> vector<16x1xf32>
    %54 = vector.broadcast %53 : vector<16x1xf32> to vector<16x16xf32>
    %55 = arith.mulf %50, %54 : vector<16x16xf32>
    %cst_18 = arith.constant dense<0.000000e+00> : vector<16x8xf32>
    %56 = tpu.matmul %55, %43, %cst_18 {dimension_numbers = #tpu.dot_dimension_numbers<[1], [0], [0], [1], [0, 0, 1, 1], [], []>} : vector<16x16xf32>, vector<16x8xf32>, vector<16x8xf32> -> vector<16x8xf32>
    %57 = vector.extract_strided_slice %12 {offsets = [0, 0], sizes = [8, 32], strides = [1, 1]} : vector<32x32xf32> to vector<8x32xf32>
    %cst_19 = arith.constant dense<0.000000e+00> : vector<16x32xf32>
    %58 = tpu.matmul %56, %57, %cst_19 {dimension_numbers = #tpu.dot_dimension_numbers<[1], [0], [0], [1], [0, 0, 1, 1], [], []>} : vector<16x8xf32>, vector<8x32xf32>, vector<16x32xf32> -> vector<16x32xf32>
    %59 = arith.addf %40, %58 : vector<16x32xf32>
    %60 = vector.extract_strided_slice %39 {offsets = [0, 8], sizes = [16, 8], strides = [1, 1]} : vector<16x96xf32> to vector<16x8xf32>
    %61 = vector.extract_strided_slice %39 {offsets = [0, 40], sizes = [16, 8], strides = [1, 1]} : vector<16x96xf32> to vector<16x8xf32>
    %62 = vector.extract_strided_slice %39 {offsets = [0, 72], sizes = [16, 8], strides = [1, 1]} : vector<16x96xf32> to vector<16x8xf32>
    %cst_20 = arith.constant dense<0.000000e+00> : vector<16x16xf32>
    %63 = tpu.matmul %60, %61, %cst_20 {dimension_numbers = #tpu.dot_dimension_numbers<[1], [1], [0], [0], [0, 0, 1, 0], [], []>} : vector<16x8xf32>, vector<16x8xf32>, vector<16x16xf32> -> vector<16x16xf32>
    %64 = arith.addf %63, %1 : vector<16x16xf32>
    %cst_21 = arith.constant dense<0xFF800000> : vector<16xf32>
    %65 = vector.multi_reduction <maximumf>, %64, %cst_21 [1] : vector<16x16xf32> to vector<16xf32>
    %66 = vector.shape_cast %65 : vector<16xf32> to vector<16x1xf32>
    %67 = vector.broadcast %66 : vector<16x1xf32> to vector<16x16xf32>
    %68 = arith.subf %64, %67 : vector<16x16xf32>
    %69 = math.exp %68 : vector<16x16xf32>
    %cst_22 = arith.constant dense<0.000000e+00> : vector<16xf32>
    %70 = vector.multi_reduction <add>, %69, %cst_22 [1] : vector<16x16xf32> to vector<16xf32>
    %71 = vector.shape_cast %70 : vector<16xf32> to vector<16x1xf32>
    %72 = tpu.reciprocal %71 {approx = true} : vector<16x1xf32> -> vector<16x1xf32>
    %73 = vector.broadcast %72 : vector<16x1xf32> to vector<16x16xf32>
    %74 = arith.mulf %69, %73 : vector<16x16xf32>
    %cst_23 = arith.constant dense<0.000000e+00> : vector<16x8xf32>
    %75 = tpu.matmul %74, %62, %cst_23 {dimension_numbers = #tpu.dot_dimension_numbers<[1], [0], [0], [1], [0, 0, 1, 1], [], []>} : vector<16x16xf32>, vector<16x8xf32>, vector<16x8xf32> -> vector<16x8xf32>
    %76 = vector.extract_strided_slice %12 {offsets = [8, 0], sizes = [8, 32], strides = [1, 1]} : vector<32x32xf32> to vector<8x32xf32>
    %cst_24 = arith.constant dense<0.000000e+00> : vector<16x32xf32>
    %77 = tpu.matmul %75, %76, %cst_24 {dimension_numbers = #tpu.dot_dimension_numbers<[1], [0], [0], [1], [0, 0, 1, 1], [], []>} : vector<16x8xf32>, vector<8x32xf32>, vector<16x32xf32> -> vector<16x32xf32>
    %78 = arith.addf %59, %77 : vector<16x32xf32>
    %79 = vector.extract_strided_slice %39 {offsets = [0, 16], sizes = [16, 8], strides = [1, 1]} : vector<16x96xf32> to vector<16x8xf32>
    %80 = vector.extract_strided_slice %39 {offsets = [0, 48], sizes = [16, 8], strides = [1, 1]} : vector<16x96xf32> to vector<16x8xf32>
    %81 = vector.extract_strided_slice %39 {offsets = [0, 80], sizes = [16, 8], strides = [1, 1]} : vector<16x96xf32> to vector<16x8xf32>
    %cst_25 = arith.constant dense<0.000000e+00> : vector<16x16xf32>
    %82 = tpu.matmul %79, %80, %cst_25 {dimension_numbers = #tpu.dot_dimension_numbers<[1], [1], [0], [0], [0, 0, 1, 0], [], []>} : vector<16x8xf32>, vector<16x8xf32>, vector<16x16xf32> -> vector<16x16xf32>
    %83 = arith.addf %82, %1 : vector<16x16xf32>
    %cst_26 = arith.constant dense<0xFF800000> : vector<16xf32>
    %84 = vector.multi_reduction <maximumf>, %83, %cst_26 [1] : vector<16x16xf32> to vector<16xf32>
    %85 = vector.shape_cast %84 : vector<16xf32> to vector<16x1xf32>
    %86 = vector.broadcast %85 : vector<16x1xf32> to vector<16x16xf32>
    %87 = arith.subf %83, %86 : vector<16x16xf32>
    %88 = math.exp %87 : vector<16x16xf32>
    %cst_27 = arith.constant dense<0.000000e+00> : vector<16xf32>
    %89 = vector.multi_reduction <add>, %88, %cst_27 [1] : vector<16x16xf32> to vector<16xf32>
    %90 = vector.shape_cast %89 : vector<16xf32> to vector<16x1xf32>
    %91 = tpu.reciprocal %90 {approx = true} : vector<16x1xf32> -> vector<16x1xf32>
    %92 = vector.broadcast %91 : vector<16x1xf32> to vector<16x16xf32>
    %93 = arith.mulf %88, %92 : vector<16x16xf32>
    %cst_28 = arith.constant dense<0.000000e+00> : vector<16x8xf32>
    %94 = tpu.matmul %93, %81, %cst_28 {dimension_numbers = #tpu.dot_dimension_numbers<[1], [0], [0], [1], [0, 0, 1, 1], [], []>} : vector<16x16xf32>, vector<16x8xf32>, vector<16x8xf32> -> vector<16x8xf32>
    %95 = vector.extract_strided_slice %12 {offsets = [16, 0], sizes = [8, 32], strides = [1, 1]} : vector<32x32xf32> to vector<8x32xf32>
    %cst_29 = arith.constant dense<0.000000e+00> : vector<16x32xf32>
    %96 = tpu.matmul %94, %95, %cst_29 {dimension_numbers = #tpu.dot_dimension_numbers<[1], [0], [0], [1], [0, 0, 1, 1], [], []>} : vector<16x8xf32>, vector<8x32xf32>, vector<16x32xf32> -> vector<16x32xf32>
    %97 = arith.addf %78, %96 : vector<16x32xf32>
    %98 = vector.extract_strided_slice %39 {offsets = [0, 24], sizes = [16, 8], strides = [1, 1]} : vector<16x96xf32> to vector<16x8xf32>
    %99 = vector.extract_strided_slice %39 {offsets = [0, 56], sizes = [16, 8], strides = [1, 1]} : vector<16x96xf32> to vector<16x8xf32>
    %100 = vector.extract_strided_slice %39 {offsets = [0, 88], sizes = [16, 8], strides = [1, 1]} : vector<16x96xf32> to vector<16x8xf32>
    %cst_30 = arith.constant dense<0.000000e+00> : vector<16x16xf32>
    %101 = tpu.matmul %98, %99, %cst_30 {dimension_numbers = #tpu.dot_dimension_numbers<[1], [1], [0], [0], [0, 0, 1, 0], [], []>} : vector<16x8xf32>, vector<16x8xf32>, vector<16x16xf32> -> vector<16x16xf32>
    %102 = arith.addf %101, %1 : vector<16x16xf32>
    %cst_31 = arith.constant dense<0xFF800000> : vector<16xf32>
    %103 = vector.multi_reduction <maximumf>, %102, %cst_31 [1] : vector<16x16xf32> to vector<16xf32>
    %104 = vector.shape_cast %103 : vector<16xf32> to vector<16x1xf32>
    %105 = vector.broadcast %104 : vector<16x1xf32> to vector<16x16xf32>
    %106 = arith.subf %102, %105 : vector<16x16xf32>
    %107 = math.exp %106 : vector<16x16xf32>
    %cst_32 = arith.constant dense<0.000000e+00> : vector<16xf32>
    %108 = vector.multi_reduction <add>, %107, %cst_32 [1] : vector<16x16xf32> to vector<16xf32>
    %109 = vector.shape_cast %108 : vector<16xf32> to vector<16x1xf32>
    %110 = tpu.reciprocal %109 {approx = true} : vector<16x1xf32> -> vector<16x1xf32>
    %111 = vector.broadcast %110 : vector<16x1xf32> to vector<16x16xf32>
    %112 = arith.mulf %107, %111 : vector<16x16xf32>
    %cst_33 = arith.constant dense<0.000000e+00> : vector<16x8xf32>
    %113 = tpu.matmul %112, %100, %cst_33 {dimension_numbers = #tpu.dot_dimension_numbers<[1], [0], [0], [1], [0, 0, 1, 1], [], []>} : vector<16x16xf32>, vector<16x8xf32>, vector<16x8xf32> -> vector<16x8xf32>
    %114 = vector.extract_strided_slice %12 {offsets = [24, 0], sizes = [8, 32], strides = [1, 1]} : vector<32x32xf32> to vector<8x32xf32>
    %cst_34 = arith.constant dense<0.000000e+00> : vector<16x32xf32>
    %115 = tpu.matmul %113, %114, %cst_34 {dimension_numbers = #tpu.dot_dimension_numbers<[1], [0], [0], [1], [0, 0, 1, 1], [], []>} : vector<16x8xf32>, vector<8x32xf32>, vector<16x32xf32> -> vector<16x32xf32>
    %116 = arith.addf %97, %115 : vector<16x32xf32>
    %117 = arith.addf %0, %116 : vector<16x32xf32>
    %118 = vector.broadcast %4 : vector<1x32xf32> to vector<16x32xf32>
    %119 = arith.addf %117, %118 : vector<16x32xf32>
    %cst_35 = arith.constant dense<0.000000e+00> : vector<16xf32>
    %120 = vector.multi_reduction <add>, %119, %cst_35 [1] : vector<16x32xf32> to vector<16xf32>
    %121 = vector.shape_cast %120 : vector<16xf32> to vector<16x1xf32>
    %cst_36 = arith.constant 3.200000e+01 : f32
    %122 = vector.broadcast %cst_36 : f32 to vector<16x1xf32>
    %123 = arith.divf %121, %122 : vector<16x1xf32>
    %124 = vector.broadcast %123 : vector<16x1xf32> to vector<16x32xf32>
    %125 = arith.subf %119, %124 : vector<16x32xf32>
    %126 = arith.mulf %125, %125 : vector<16x32xf32>
    %cst_37 = arith.constant dense<0.000000e+00> : vector<16xf32>
    %127 = vector.multi_reduction <add>, %126, %cst_37 [1] : vector<16x32xf32> to vector<16xf32>
    %128 = vector.shape_cast %127 : vector<16xf32> to vector<16x1xf32>
    %cst_38 = arith.constant 3.100000e+01 : f32
    %129 = vector.broadcast %cst_38 : f32 to vector<16x1xf32>
    %130 = arith.divf %128, %129 : vector<16x1xf32>
    %131 = math.sqrt %130 : vector<16x1xf32>
    %cst_39 = arith.constant 9.99999997E-7 : f32
    %132 = vector.broadcast %cst_39 : f32 to vector<16x1xf32>
    %133 = arith.addf %131, %132 : vector<16x1xf32>
    %134 = tpu.reciprocal %133 : vector<16x1xf32> -> vector<16x1xf32>
    %135 = vector.broadcast %123 : vector<16x1xf32> to vector<16x32xf32>
    %136 = arith.subf %119, %135 : vector<16x32xf32>
    %137 = vector.broadcast %7 : vector<1x32xf32> to vector<16x32xf32>
    %138 = arith.mulf %137, %136 : vector<16x32xf32>
    %139 = vector.broadcast %134 : vector<16x1xf32> to vector<16x32xf32>
    %140 = arith.mulf %138, %139 : vector<16x32xf32>
    %141 = vector.broadcast %8 : vector<1x32xf32> to vector<16x32xf32>
    %142 = arith.addf %140, %141 : vector<16x32xf32>
    %cst_40 = arith.constant dense<0.000000e+00> : vector<16x64xf32>
    %143 = tpu.matmul %142, %13, %cst_40 {dimension_numbers = #tpu.dot_dimension_numbers<[1], [0], [0], [1], [0, 0, 1, 1], [], []>} : vector<16x32xf32>, vector<32x64xf32>, vector<16x64xf32> -> vector<16x64xf32>
    %144 = vector.broadcast %9 : vector<1x64xf32> to vector<16x64xf32>
    %145 = arith.addf %143, %144 : vector<16x64xf32>
    %cst_41 = arith.constant 0.000000e+00 : f32
    %146 = vector.broadcast %cst_41 : f32 to vector<16x64xf32>
    %147 = arith.maximumf %145, %146 : vector<16x64xf32>
    %c0_42 = arith.constant 0 : index
    %c0_43 = arith.constant 0 : index
    %148 = vector.load %arg4[%c0_42, %c0_43] : memref<64x32xf32, #tpu.memory_space<vmem>>, vector<64x32xf32>
    %cst_44 = arith.constant dense<0.000000e+00> : vector<16x32xf32>
    %149 = tpu.matmul %147, %148, %cst_44 {dimension_numbers = #tpu.dot_dimension_numbers<[1], [0], [0], [1], [0, 0, 1, 1], [], []>} : vector<16x64xf32>, vector<64x32xf32>, vector<16x32xf32> -> vector<16x32xf32>
    %150 = vector.broadcast %10 : vector<1x32xf32> to vector<16x32xf32>
    %151 = arith.addf %149, %150 : vector<16x32xf32>
    %152 = arith.addf %119, %151 : vector<16x32xf32>
    %c0_45 = arith.constant 0 : index
    %c0_46 = arith.constant 0 : index
    %153 = vector.load %arg6[%c0_45, %c0_46] : memref<16x32xf32, #tpu.memory_space<vmem>>, vector<16x32xf32>
    tpu.vector_store %arg6[%c0_45, %c0_46], %152 {strides = array<i32>} : memref<16x32xf32, #tpu.memory_space<vmem>>, vector<16x32xf32>,
    return
  }
  func.func @transform_0(%arg0: i32) -> (i32, i32) {
    %c0_i32 = arith.constant 0 : i32
    %c0_i32_0 = arith.constant 0 : i32
    %c0_i32_1 = arith.constant 0 : i32
    return %c0_i32, %c0_i32_0 : i32, i32
  }
  func.func @transform_1(%arg0: i32) -> (i32, i32) {
    %c0_i32 = arith.constant 0 : i32
    %c0_i32_0 = arith.constant 0 : i32
    %c0_i32_1 = arith.constant 0 : i32
    return %c0_i32, %c0_i32_0 : i32, i32
  }
  func.func @transform_2(%arg0: i32) -> (i32, i32) {
    %c0_i32 = arith.constant 0 : i32
    %c0_i32_0 = arith.constant 0 : i32
    %c0_i32_1 = arith.constant 0 : i32
    return %c0_i32, %c0_i32_0 : i32, i32
  }
  func.func @transform_3(%arg0: i32) -> (i32, i32) {
    %c0_i32 = arith.constant 0 : i32
    %c0_i32_0 = arith.constant 0 : i32
    %c0_i32_1 = arith.constant 0 : i32
    return %c0_i32, %c0_i32_0 : i32, i32
  }
  func.func @transform_4(%arg0: i32) -> (i32, i32) {
    %c0_i32 = arith.constant 0 : i32
    %c0_i32_0 = arith.constant 0 : i32
    %c0_i32_1 = arith.constant 0 : i32
    return %c0_i32, %c0_i32_0 : i32, i32
  }
  func.func @transform_5(%arg0: i32) -> (i32, i32) {
    %c0_i32 = arith.constant 0 : i32
    %c0_i32_0 = arith.constant 0 : i32
    %c0_i32_1 = arith.constant 0 : i32
    return %c0_i32, %c0_i32_0 : i32, i32
  }
}

</mosaic_0001>

<llo_original>
// kernel: tpu_custom_call.1
$region0: #{tpu_custom_call.1}
  #allocation0 [shape = 'u32[]', space=smem, size = 0x4, offset = 0x4, fixed_abs, tag = 'smem constant byte address 0x4 - core index']
  #allocation1 [shape = 'u32[72,128]{1,0:T(1,128)}', space=vmem, size = 0x9000, scoped, tag = 'internal scratch']
  %s0 = inlined_call_operand.hbm [shape: f32[16,32], index: 0, kind: input, shape index: {}]
  %s1 = inlined_call_operand.hbm [shape: f32[16,16], index: 1, kind: input, shape index: {}]
  %s2 = inlined_call_operand.vmem [shape: f32[32,320], index: 2, kind: input, shape index: {}]
  %s3 = inlined_call_operand.vmem [shape: f32[64,32], index: 3, kind: input, shape index: {}]
  %s4 = inlined_call_operand.hbm [shape: f32[8,128], index: 4, kind: input, shape index: {}]
  %s5 = inlined_call_operand.hbm [shape: f32[16,32], index: 5, kind: output, shape index: {}]
  %s6 = sld [smem:[#allocation0]]
  $region42: #{tpu_custom_call.1} parent=0
    _
  %s8 = ssub.s32 1, %s6
  %s9 = scalar_select 0, %s8, %s6
  $region1: #{tpu_custom_call.1} parent=0
    #allocation2 [shape = 'u8[8192]{0}', space=vmem, size = 0x2000, scoped, tag = 'input window, operand 0, single buffered']
    #allocation3 [shape = 's32[1]{0}', space=sflag, size = 0x4, scoped, tag = 'scoped memory for tpu_custom_call.1']
    #allocation4 [shape = 's32[1]{0}', space=sflag, size = 0x4, scoped, tag = 'scoped memory for tpu_custom_call.1']
    #allocation5 [shape = 'u8[8192]{0}', space=vmem, size = 0x2000, scoped, tag = 'input window, operand 1, single buffered']
    #allocation6 [shape = 's32[1]{0}', space=sflag, size = 0x4, scoped, tag = 'scoped memory for tpu_custom_call.1']
    #allocation7 [shape = 'u8[4096]{0}', space=vmem, size = 0x1000, scoped, tag = 'input window, operand 4, single buffered']
    #allocation8 [shape = 'u8[8192]{0}', space=vmem, size = 0x2000, scoped, tag = 'output window, operand 0, single buffered']
    %10 = vsyncpa [#allocation3], 0
    %11 = vsyncpa [#allocation6], 0
    %12 = vsyncpa [#allocation4], 0
    // Predicated region
    $region2: #{tpu_custom_call.1} parent=1 // pred_check
      _
    $region3: #{tpu_custom_call.1} parent=1 // pred_check_branch
      %14 = sbr.rel (0) target = $region5
    $region4: #{tpu_custom_call.1} parent=1 // pred_region
      %16 = vsyncadd [#allocation3], 0
      %s17 = sshll.u32 %s0, 4
      %s18 = int_to_ptr.hbm [resolvable:$true] %s17
      %s19 = sshll.u32 [#allocation2], 4
      %s20 = int_to_ptr.vmem [resolvable:$true] %s19
      %25 = dma.hbm_to_vmem [thread:$0]  %s18, 256, %s20, [#allocation3], 128, 128, 8
    $region5: #{tpu_custom_call.1} parent=1 // pred_fallthru
      _
    // Predicated region
    $region6: #{tpu_custom_call.1} parent=1 // pred_check
      _
    $region7: #{tpu_custom_call.1} parent=1 // pred_check_branch
      %27 = sbr.rel (0) target = $region9
    $region8: #{tpu_custom_call.1} parent=1 // pred_region
      %29 = vsyncadd [#allocation6], 0
      %s30 = sshll.u32 %s1, 4
      %s31 = int_to_ptr.hbm [resolvable:$true] %s30
      %s32 = sshll.u32 [#allocation5], 4
      %s33 = int_to_ptr.vmem [resolvable:$true] %s32
      %38 = dma.hbm_to_vmem [thread:$0]  %s31, 256, %s33, [#allocation6], 128, 128, 8
    $region9: #{tpu_custom_call.1} parent=1 // pred_fallthru
      _
    // Predicated region
    $region10: #{tpu_custom_call.1} parent=1 // pred_check
      _
    $region11: #{tpu_custom_call.1} parent=1 // pred_check_branch
      %40 = sbr.rel (0) target = $region13
    $region12: #{tpu_custom_call.1} parent=1 // pred_region
      _
    $region13: #{tpu_custom_call.1} parent=1 // pred_fallthru
      _
    // Predicated region
    $region14: #{tpu_custom_call.1} parent=1 // pred_check
      _
    $region15: #{tpu_custom_call.1} parent=1 // pred_check_branch
      %42 = sbr.rel (0) target = $region17
    $region16: #{tpu_custom_call.1} parent=1 // pred_region
      _
    $region17: #{tpu_custom_call.1} parent=1 // pred_fallthru
      _
    // Predicated region
    $region18: #{tpu_custom_call.1} parent=1 // pred_check
      _
    $region19: #{tpu_custom_call.1} parent=1 // pred_check_branch
      %44 = sbr.rel (0) target = $region21
    $region20: #{tpu_custom_call.1} parent=1 // pred_region
      %46 = vsyncadd [#allocation6], 0
      %s48 = sshll.u32 %s4, 4
      %s49 = int_to_ptr.hbm [resolvable:$true] %s48
      %s50 = sshll.u32 [#allocation7], 4
      %s51 = int_to_ptr.vmem [resolvable:$true] %s50
      %53 = dma.hbm_to_vmem [thread:$0]  %s49, 128, %s51, [#allocation6]
    $region21: #{tpu_custom_call.1} parent=1 // pred_fallthru
      _
    // Predicated region
    $region22: #{tpu_custom_call.1} parent=1 // pred_check
      _
    $region23: #{tpu_custom_call.1} parent=1 // pred_check_branch
      %55 = sbr.rel (0) target = $region25
    $region24: #{tpu_custom_call.1} parent=1 // pred_region
      %57 = dma.done [#allocation3], 256
    $region25: #{tpu_custom_call.1} parent=1 // pred_fallthru
      _
    // Predicated region
    $region26: #{tpu_custom_call.1} parent=1 // pred_check
      _
    $region27: #{tpu_custom_call.1} parent=1 // pred_check_branch
      %59 = sbr.rel (0) target = $region29
    $region28: #{tpu_custom_call.1} parent=1 // pred_region
      %61 = dma.done [#allocation6], 256
    $region29: #{tpu_custom_call.1} parent=1 // pred_fallthru
      _
    // Predicated region
    $region30: #{tpu_custom_call.1} parent=1 // pred_check
      _
    $region31: #{tpu_custom_call.1} parent=1 // pred_check_branch
      %63 = sbr.rel (0) target = $region33
    $region32: #{tpu_custom_call.1} parent=1 // pred_region
      %65 = dma.done [#allocation6], 128
    $region33: #{tpu_custom_call.1} parent=1 // pred_fallthru
      _
    %v66 = vld [vmem:[#allocation2] sm:$0xff]
    %v67 = vld [vmem:[#allocation2 + $0x8] sm:$0xff]
    %v68 = vld [vmem:[#allocation5] sm:$0xff]
    %v69 = vld [vmem:[#allocation5 + $0x8] sm:$0xff]
    %v70 = vld [vmem:[#allocation7] sm:$0xff]
    %v71 = vld [vmem:[%s2] sm:$0xff]
    %v72 = vld [vmem:[%s2 + $0x18] sm:$0xff]
    %v73 = vld [vmem:[%s2 + $0x30] sm:$0xff]
    %v74 = vld [vmem:[%s2 + $0x48] sm:$0xff]
    %v75 = vld [vmem:[%s2 + $0x8] sm:$0xff]
    %v76 = vld [vmem:[%s2 + $0x20] sm:$0xff]
    %v77 = vld [vmem:[%s2 + $0x38] sm:$0xff]
    %v78 = vld [vmem:[%s2 + $0x50] sm:$0xff]
    %v79 = vld [vmem:[%s2 + $0x10] sm:$0xff]
    %v80 = vld [vmem:[%s2 + $0x28] sm:$0xff]
    %v81 = vld [vmem:[%s2 + $0x40] sm:$0xff]
    %v82 = vld [vmem:[%s2 + $0x58] sm:$0xff]
    %vm83 = vcmask 261120
    %v84 = vsel %vm83, %v66, 0.0
    %85 = vadd.xlane.f32.xlu0 %v84
    %v86 = vpop.xlane.xlu0 %85
    %v87 = vsel %vm83, %v67, 0.0
    %88 = vadd.xlane.f32.xlu0 %v87
    %v89 = vpop.xlane.xlu0 %88
    %v90 = vrcp.pop 32.0
    %v91 = vmul.f32 32.0, %v90
    %v92 = vsub.f32 1.0, %v91
    %v93 = vmul.f32 %v90, %v92
    %v94 = vadd.f32 %v90, %v93
    %vm95 = vweird.f32 %v90
    %v96 = vsel %vm95, %v90, %v94
    %v97 = vmul.f32 %v86, %v96
    %v98 = vmul.f32 %v89, %v96
    %v99 = vsub.f32 %v66, %v97
    %v100 = vsub.f32 %v67, %v98
    %v101 = vmul.f32 %v99, %v99
    %v102 = vmul.f32 %v100, %v100
    %v103 = vsel %vm83, %v101, 0.0
    %104 = vadd.xlane.f32.xlu0 %v103
    %v105 = vpop.xlane.xlu0 %104
    %v106 = vsel %vm83, %v102, 0.0
    %107 = vadd.xlane.f32.xlu0 %v106
    %v108 = vpop.xlane.xlu0 %107
    %v109 = vrcp.pop 31.0
    %v110 = vmul.f32 31.0, %v109
    %v111 = vsub.f32 1.0, %v110
    %v112 = vmul.f32 %v109, %v111
    %v113 = vadd.f32 %v109, %v112
    %vm114 = vweird.f32 %v109
    %v115 = vsel %vm114, %v109, %v113
    %v116 = vmul.f32 %v105, %v115
    %v117 = vmul.f32 %v108, %v115
    %v118 = vrsqrt.pop %v116
    %v119 = vmul.f32 %v118, %v116
    %v120 = vmul.f32 %v119, %v118
    %v121 = vmul.f32 0.5, %v120
    %v122 = vsub.f32 1.5, %v121
    %v123 = vmul.f32 %v118, %v122
    %v124 = vmul.f32 %v116, %v123
    %vm125 = vcmp.eq.f32.partialorder %v116, inf
    %v126 = vsel %vm125, %v116, %v124
    %vm127 = vcmp.eq.f32.partialorder %v116, 0.0
    %v128 = vand.u32 %v116, 2147483648
    %v129 = vsel %vm127, %v128, %v126
    %v130 = vrsqrt.pop %v117
    %v131 = vmul.f32 %v130, %v117
    %v132 = vmul.f32 %v131, %v130
    %v133 = vmul.f32 0.5, %v132
    %v134 = vsub.f32 1.5, %v133
    %v135 = vmul.f32 %v130, %v134
    %v136 = vmul.f32 %v117, %v135
    %vm137 = vcmp.eq.f32.partialorder %v117, inf
    %v138 = vsel %vm137, %v117, %v136
    %vm139 = vcmp.eq.f32.partialorder %v117, 0.0
    %v140 = vand.u32 %v117, 2147483648
    %v141 = vsel %vm139, %v140, %v138
    %v142 = vadd.f32 %v129, 1e-06
    %v143 = vadd.f32 %v141, 1e-06
    %v144 = vrcp.pop %v142
    %v145 = vmul.f32 %v142, %v144
    %v146 = vsub.f32 1.0, %v145
    %v147 = vmul.f32 %v144, %v146
    %v148 = vadd.f32 %v144, %v147
    %vm149 = vweird.f32 %v142
    %vm150 = vweird.f32 %v144
    %vm151 = vmor %vm149, %vm150
    %v152 = vsel %vm151, %v144, %v148
    %v153 = vand.u32 2147483647, %v142
    %vm154 = vcmp.eq.f32.partialorder %v153, 8.507059e+37
    %v155 = vand.u32 %v142, 2147483648
    %v156 = vor.u32 1.1754944e-38, %v155
    %v157 = vsel %vm154, %v156, %v152
    %v158 = vrcp.pop %v143
    %v159 = vmul.f32 %v143, %v158
    %v160 = vsub.f32 1.0, %v159
    %v161 = vmul.f32 %v158, %v160
    %v162 = vadd.f32 %v158, %v161
    %vm163 = vweird.f32 %v143
    %vm164 = vweird.f32 %v158
    %vm165 = vmor %vm163, %vm164
    %v166 = vsel %vm165, %v158, %v162
    %v167 = vand.u32 2147483647, %v143
    %vm168 = vcmp.eq.f32.partialorder %v167, 8.507059e+37
    %v169 = vand.u32 %v143, 2147483648
    %v170 = vor.u32 1.1754944e-38, %v169
    %v171 = vsel %vm168, %v170, %v166
    %v172 = vperm.slane %v70, 2
    %v173 = vmul.f32 %v172, %v99
    %v174 = vmul.f32 %v172, %v100
    %v175 = vmul.f32 %v173, %v157
    %v176 = vmul.f32 %v174, %v171
    %v177 = vperm.slane %v70, 3
    %v178 = vadd.f32 %v175, %v177
    %v179 = vadd.f32 %v176, %v177
    %v180 = vperm.slane %v70, 0
    %v182 = vsel %vm83, %v178, 0
    %v185 = vsel %vm83, %v179, 0
    %187 = vmatpush.msra.mxu0 0.0
    %188 = vmatpush.msra.mxu0 0.0
    %189 = vmatpush.msra.mxu0 0.0
    %190 = vmatpush.msra.mxu0 0.0
    %191 = vmatpush.msra.mxu0 0.0
    %192 = vmatpush.msra.mxu0 0.0
    %193 = vmatpush.msra.mxu0 0.0
    %194 = vmatpush.msra.mxu0 0.0
    %195 = vmatpush.msra.mxu0 0.0
    %196 = vmatpush.msra.mxu0 0.0
    %197 = vmatpush.msra.mxu0 0.0
    %198 = vmatpush.msra.mxu0 0.0
    %199 = vmatpush.msra.mxu0 %v74
    %200 = vmatpush.msra.mxu0 %v73
    %201 = vmatpush.msra.mxu0 %v72
    %202 = vmatpush.msra.mxu0 %v71
    %203 = vmatmul.f32.gmra.mxu0 %v182
    %v204 = vpop.f32.mrf.mxu0
    %v205 = vadd.f32 %v180, %v204
    %206 = vmatmul.f32.gmra.mxu0 %v185
    %v207 = vpop.f32.mrf.mxu0
    %v208 = vadd.f32 %v180, %v207
    %209 = vdwg.mxu0
    %212 = vrot.lane.b32.xlu0 %v205, 96
    %v213 = vpop.permute.xlu0 %212
    %214 = vrot.lane.b32.xlu0 %v208, 96
    %v215 = vpop.permute.xlu0 %214
    %vm216 = vcmask 64512
    %v217 = vsel %vm216, %v205, 0
    %v219 = vsel %vm216, %v208, 0
    %v221 = vsel %vm216, %v213, 0
    %v223 = vsel %vm216, %v215, 0
    %225 = vmatpush.xpose.msra.mxu0 0.0
    %226 = vmatpush.xpose.msra.mxu0 0.0
    %227 = vmatpush.xpose.msra.mxu0 0.0
    %228 = vmatpush.xpose.msra.mxu0 0.0
    %229 = vmatpush.xpose.msra.mxu0 0.0
    %230 = vmatpush.xpose.msra.mxu0 0.0
    %231 = vmatpush.xpose.msra.mxu0 0.0
    %232 = vmatpush.xpose.msra.mxu0 0.0
    %233 = vmatpush.xpose.msra.mxu0 0.0
    %234 = vmatpush.xpose.msra.mxu0 0.0
    %235 = vmatpush.xpose.msra.mxu0 0.0
    %236 = vmatpush.xpose.msra.mxu0 0.0
    %237 = vmatpush.xpose.msra.mxu0 0.0
    %238 = vmatpush.xpose.msra.mxu0 0.0
    %239 = vmatpush.xpose.msra.mxu0 %v223
    %240 = vmatpush.xpose.msra.mxu0 %v221
    %241 = vmatmul.f32.gmra.mxu0 %v217
    %v242 = vpop.f32.mrf.mxu0
    %v243 = vadd.f32 %v68, %v242
    %244 = vmatmul.f32.gmra.mxu0 %v219
    %v245 = vpop.f32.mrf.mxu0
    %v246 = vadd.f32 %v69, %v245
    %247 = vdwg.mxu0
    %vm248 = vcmask 130048
    %v249 = vsel %vm248, %v243, -inf
    %250 = vmax.xlane.f32.xlu0 %v249
    %v251 = vpop.xlane.xlu0 %250
    %v252 = vsel %vm248, %v246, -inf
    %253 = vmax.xlane.f32.xlu0 %v252
    %v254 = vpop.xlane.xlu0 %253
    %v255 = vsub.f32 %v243, %v251
    %v256 = vsub.f32 %v246, %v254
    %v257 = vmul.f32 %v255, 1.442695
    %v258 = vpow.pop %v257
    %v259 = vmul.f32 %v256, 1.442695
    %v260 = vpow.pop %v259
    %v261 = vsel %vm248, %v258, 0.0
    %262 = vadd.xlane.f32.xlu0 %v261
    %v263 = vpop.xlane.xlu0 %262
    %v264 = vsel %vm248, %v260, 0.0
    %265 = vadd.xlane.f32.xlu0 %v264
    %v266 = vpop.xlane.xlu0 %265
    %v267 = vrcp.pop %v263
    %v268 = vrcp.pop %v266
    %v269 = vmul.f32 %v258, %v267
    %v270 = vmul.f32 %v260, %v268
    %271 = vrot.lane.b32.xlu0 %v205, 64
    %v272 = vpop.permute.xlu0 %271
    %273 = vrot.lane.b32.xlu0 %v208, 64
    %v274 = vpop.permute.xlu0 %273
    %v278 = vsel %vm248, %v269, 0
    %v281 = vsel %vm248, %v270, 0
    %283 = vmatpush.msra.mxu0 0.0
    %284 = vmatpush.msra.mxu0 0.0
    %285 = vmatpush.msra.mxu0 0.0
    %286 = vmatpush.msra.mxu0 0.0
    %287 = vmatpush.msra.mxu0 0.0
    %288 = vmatpush.msra.mxu0 0.0
    %289 = vmatpush.msra.mxu0 0.0
    %290 = vmatpush.msra.mxu0 0.0
    %291 = vmatpush.msra.mxu0 0.0
    %292 = vmatpush.msra.mxu0 0.0
    %293 = vmatpush.msra.mxu0 0.0
    %294 = vmatpush.msra.mxu0 0.0
    %295 = vmatpush.msra.mxu0 0.0
    %296 = vmatpush.msra.mxu0 0.0
    %297 = vmatpush.msra.mxu0 %v274
    %298 = vmatpush.msra.mxu0 %v272
    %299 = vmatmul.f32.gmra.mxu0 %v278
    %v300 = vpop.f32.mrf.mxu0
    %v301 = vadd.f32 0.0, %v300
    %302 = vmatmul.f32.gmra.mxu0 %v281
    %v303 = vpop.f32.mrf.mxu0
    %v304 = vadd.f32 0.0, %v303
    %305 = vdwg.mxu0
    %306 = vrot.lane.b32.xlu0 %v205, 120
    %v307 = vpop.permute.xlu0 %306
    %308 = vrot.lane.b32.xlu0 %v208, 120
    %v309 = vpop.permute.xlu0 %308
    %310 = vrot.lane.b32.xlu0 %v205, 88
    %v311 = vpop.permute.xlu0 %310
    %312 = vrot.lane.b32.xlu0 %v208, 88
    %v313 = vpop.permute.xlu0 %312
    %v314 = vsel %vm216, %v307, 0
    %v316 = vsel %vm216, %v309, 0
    %v318 = vsel %vm216, %v311, 0
    %v320 = vsel %vm216, %v313, 0
    %322 = vmatpush.xpose.msra.mxu0 0.0
    %323 = vmatpush.xpose.msra.mxu0 0.0
    %324 = vmatpush.xpose.msra.mxu0 0.0
    %325 = vmatpush.xpose.msra.mxu0 0.0
    %326 = vmatpush.xpose.msra.mxu0 0.0
    %327 = vmatpush.xpose.msra.mxu0 0.0
    %328 = vmatpush.xpose.msra.mxu0 0.0
    %329 = vmatpush.xpose.msra.mxu0 0.0
    %330 = vmatpush.xpose.msra.mxu0 0.0
    %331 = vmatpush.xpose.msra.mxu0 0.0
    %332 = vmatpush.xpose.msra.mxu0 0.0
    %333 = vmatpush.xpose.msra.mxu0 0.0
    %334 = vmatpush.xpose.msra.mxu0 0.0
    %335 = vmatpush.xpose.msra.mxu0 0.0
    %336 = vmatpush.xpose.msra.mxu0 %v320
    %337 = vmatpush.xpose.msra.mxu0 %v318
    %338 = vmatmul.f32.gmra.mxu0 %v314
    %v339 = vpop.f32.mrf.mxu0
    %v340 = vadd.f32 %v68, %v339
    %341 = vmatmul.f32.gmra.mxu0 %v316
    %v342 = vpop.f32.mrf.mxu0
    %v343 = vadd.f32 %v69, %v342
    %344 = vdwg.mxu0
    %v345 = vsel %vm248, %v340, -inf
    %346 = vmax.xlane.f32.xlu0 %v345
    %v347 = vpop.xlane.xlu0 %346
    %v348 = vsel %vm248, %v343, -inf
    %349 = vmax.xlane.f32.xlu0 %v348
    %v350 = vpop.xlane.xlu0 %349
    %v351 = vsub.f32 %v340, %v347
    %v352 = vsub.f32 %v343, %v350
    %v353 = vmul.f32 %v351, 1.442695
    %v354 = vpow.pop %v353
    %v355 = vmul.f32 %v352, 1.442695
    %v356 = vpow.pop %v355
    %v357 = vsel %vm248, %v354, 0.0
    %358 = vadd.xlane.f32.xlu0 %v357
    %v359 = vpop.xlane.xlu0 %358
    %v360 = vsel %vm248, %v356, 0.0
    %361 = vadd.xlane.f32.xlu0 %v360
    %v362 = vpop.xlane.xlu0 %361
    %v363 = vrcp.pop %v359
    %v364 = vrcp.pop %v362
    %v365 = vmul.f32 %v354, %v363
    %v366 = vmul.f32 %v356, %v364
    %367 = vrot.lane.b32.xlu0 %v205, 56
    %v368 = vpop.permute.xlu0 %367
    %369 = vrot.lane.b32.xlu0 %v208, 56
    %v370 = vpop.permute.xlu0 %369
    %v374 = vsel %vm248, %v365, 0
    %v377 = vsel %vm248, %v366, 0
    %379 = vmatpush.msra.mxu0 0.0
    %380 = vmatpush.msra.mxu0 0.0
    %381 = vmatpush.msra.mxu0 0.0
    %382 = vmatpush.msra.mxu0 0.0
    %383 = vmatpush.msra.mxu0 0.0
    %384 = vmatpush.msra.mxu0 0.0
    %385 = vmatpush.msra.mxu0 0.0
    %386 = vmatpush.msra.mxu0 0.0
    %387 = vmatpush.msra.mxu0 0.0
    %388 = vmatpush.msra.mxu0 0.0
    %389 = vmatpush.msra.mxu0 0.0
    %390 = vmatpush.msra.mxu0 0.0
    %391 = vmatpush.msra.mxu0 0.0
    %392 = vmatpush.msra.mxu0 0.0
    %393 = vmatpush.msra.mxu0 %v370
    %394 = vmatpush.msra.mxu0 %v368
    %395 = vmatmul.f32.gmra.mxu0 %v374
    %v396 = vpop.f32.mrf.mxu0
    %v397 = vadd.f32 0.0, %v396
    %398 = vmatmul.f32.gmra.mxu0 %v377
    %v399 = vpop.f32.mrf.mxu0
    %v400 = vadd.f32 0.0, %v399
    %401 = vdwg.mxu0
    %v403 = vsel %vm216, %v397, 0
    %v406 = vsel %vm216, %v400, 0
    %408 = vmatpush.msra.mxu0 0.0
    %409 = vmatpush.msra.mxu0 0.0
    %410 = vmatpush.msra.mxu0 0.0
    %411 = vmatpush.msra.mxu0 0.0
    %412 = vmatpush.msra.mxu0 0.0
    %413 = vmatpush.msra.mxu0 0.0
    %414 = vmatpush.msra.mxu0 0.0
    %415 = vmatpush.msra.mxu0 0.0
    %416 = vmatpush.msra.mxu0 0.0
    %417 = vmatpush.msra.mxu0 0.0
    %418 = vmatpush.msra.mxu0 0.0
    %419 = vmatpush.msra.mxu0 0.0
    %420 = vmatpush.msra.mxu0 0.0
    %421 = vmatpush.msra.mxu0 0.0
    %422 = vmatpush.msra.mxu0 0.0
    %423 = vmatpush.msra.mxu0 %v76
    %424 = vmatmul.f32.gmra.mxu0 %v403
    %v425 = vpop.f32.mrf.mxu0
    %v426 = vadd.f32 0.0, %v425
    %427 = vmatmul.f32.gmra.mxu0 %v406
    %v428 = vpop.f32.mrf.mxu0
    %v429 = vadd.f32 0.0, %v428
    %430 = vdwg.mxu0
    %v432 = vsel %vm216, %v301, 0
    %v435 = vsel %vm216, %v304, 0
    %437 = vmatpush.msra.mxu0 0.0
    %438 = vmatpush.msra.mxu0 0.0
    %439 = vmatpush.msra.mxu0 0.0
    %440 = vmatpush.msra.mxu0 0.0
    %441 = vmatpush.msra.mxu0 0.0
    %442 = vmatpush.msra.mxu0 0.0
    %443 = vmatpush.msra.mxu0 0.0
    %444 = vmatpush.msra.mxu0 0.0
    %445 = vmatpush.msra.mxu0 0.0
    %446 = vmatpush.msra.mxu0 0.0
    %447 = vmatpush.msra.mxu0 0.0
    %448 = vmatpush.msra.mxu0 0.0
    %449 = vmatpush.msra.mxu0 0.0
    %450 = vmatpush.msra.mxu0 0.0
    %451 = vmatpush.msra.mxu0 0.0
    %452 = vmatpush.msra.mxu0 %v75
    %453 = vmatmul.f32.gmra.mxu0 %v432
    %v454 = vpop.f32.mrf.mxu0
    %v455 = vadd.f32 %v426, %v454
    %456 = vmatmul.f32.gmra.mxu0 %v435
    %v457 = vpop.f32.mrf.mxu0
    %v458 = vadd.f32 %v429, %v457
    %459 = vdwg.mxu0
    %460 = vrot.lane.b32.xlu0 %v205, 112
    %v461 = vpop.permute.xlu0 %460
    %462 = vrot.lane.b32.xlu0 %v208, 112
    %v463 = vpop.permute.xlu0 %462
    %464 = vrot.lane.b32.xlu0 %v205, 80
    %v465 = vpop.permute.xlu0 %464
    %466 = vrot.lane.b32.xlu0 %v208, 80
    %v467 = vpop.permute.xlu0 %466
    %v468 = vsel %vm216, %v461, 0
    %v470 = vsel %vm216, %v463, 0
    %v472 = vsel %vm216, %v465, 0
    %v474 = vsel %vm216, %v467, 0
    %476 = vmatpush.xpose.msra.mxu0 0.0
    %477 = vmatpush.xpose.msra.mxu0 0.0
    %478 = vmatpush.xpose.msra.mxu0 0.0
    %479 = vmatpush.xpose.msra.mxu0 0.0
    %480 = vmatpush.xpose.msra.mxu0 0.0
    %481 = vmatpush.xpose.msra.mxu0 0.0
    %482 = vmatpush.xpose.msra.mxu0 0.0
    %483 = vmatpush.xpose.msra.mxu0 0.0
    %484 = vmatpush.xpose.msra.mxu0 0.0
    %485 = vmatpush.xpose.msra.mxu0 0.0
    %486 = vmatpush.xpose.msra.mxu0 0.0
    %487 = vmatpush.xpose.msra.mxu0 0.0
    %488 = vmatpush.xpose.msra.mxu0 0.0
    %489 = vmatpush.xpose.msra.mxu0 0.0
    %490 = vmatpush.xpose.msra.mxu0 %v474
    %491 = vmatpush.xpose.msra.mxu0 %v472
    %492 = vmatmul.f32.gmra.mxu0 %v468
    %v493 = vpop.f32.mrf.mxu0
    %v494 = vadd.f32 %v68, %v493
    %495 = vmatmul.f32.gmra.mxu0 %v470
    %v496 = vpop.f32.mrf.mxu0
    %v497 = vadd.f32 %v69, %v496
    %498 = vdwg.mxu0
    %v499 = vsel %vm248, %v494, -inf
    %500 = vmax.xlane.f32.xlu0 %v499
    %v501 = vpop.xlane.xlu0 %500
    %v502 = vsel %vm248, %v497, -inf
    %503 = vmax.xlane.f32.xlu0 %v502
    %v504 = vpop.xlane.xlu0 %503
    %v505 = vsub.f32 %v494, %v501
    %v506 = vsub.f32 %v497, %v504
    %v507 = vmul.f32 %v505, 1.442695
    %v508 = vpow.pop %v507
    %v509 = vmul.f32 %v506, 1.442695
    %v510 = vpow.pop %v509
    %v511 = vsel %vm248, %v508, 0.0
    %512 = vadd.xlane.f32.xlu0 %v511
    %v513 = vpop.xlane.xlu0 %512
    %v514 = vsel %vm248, %v510, 0.0
    %515 = vadd.xlane.f32.xlu0 %v514
    %v516 = vpop.xlane.xlu0 %515
    %v517 = vrcp.pop %v513
    %v518 = vrcp.pop %v516
    %v519 = vmul.f32 %v508, %v517
    %v520 = vmul.f32 %v510, %v518
    %521 = vrot.lane.b32.xlu0 %v205, 48
    %v522 = vpop.permute.xlu0 %521
    %523 = vrot.lane.b32.xlu0 %v208, 48
    %v524 = vpop.permute.xlu0 %523
    %v528 = vsel %vm248, %v519, 0
    %v531 = vsel %vm248, %v520, 0
    %533 = vmatpush.msra.mxu0 0.0
    %534 = vmatpush.msra.mxu0 0.0
    %535 = vmatpush.msra.mxu0 0.0
    %536 = vmatpush.msra.mxu0 0.0
    %537 = vmatpush.msra.mxu0 0.0
    %538 = vmatpush.msra.mxu0 0.0
    %539 = vmatpush.msra.mxu0 0.0
    %540 = vmatpush.msra.mxu0 0.0
    %541 = vmatpush.msra.mxu0 0.0
    %542 = vmatpush.msra.mxu0 0.0
    %543 = vmatpush.msra.mxu0 0.0
    %544 = vmatpush.msra.mxu0 0.0
    %545 = vmatpush.msra.mxu0 0.0
    %546 = vmatpush.msra.mxu0 0.0
    %547 = vmatpush.msra.mxu0 %v524
    %548 = vmatpush.msra.mxu0 %v522
    %549 = vmatmul.f32.gmra.mxu0 %v528
    %v550 = vpop.f32.mrf.mxu0
    %v551 = vadd.f32 0.0, %v550
    %552 = vmatmul.f32.gmra.mxu0 %v531
    %v553 = vpop.f32.mrf.mxu0
    %v554 = vadd.f32 0.0, %v553
    %555 = vdwg.mxu0
    %v557 = vsel %vm216, %v551, 0
    %v560 = vsel %vm216, %v554, 0
    %562 = vmatpush.msra.mxu0 0.0
    %563 = vmatpush.msra.mxu0 0.0
    %564 = vmatpush.msra.mxu0 0.0
    %565 = vmatpush.msra.mxu0 0.0
    %566 = vmatpush.msra.mxu0 0.0
    %567 = vmatpush.msra.mxu0 0.0
    %568 = vmatpush.msra.mxu0 0.0
    %569 = vmatpush.msra.mxu0 0.0
    %570 = vmatpush.msra.mxu0 0.0
    %571 = vmatpush.msra.mxu0 0.0
    %572 = vmatpush.msra.mxu0 0.0
    %573 = vmatpush.msra.mxu0 0.0
    %574 = vmatpush.msra.mxu0 0.0
    %575 = vmatpush.msra.mxu0 0.0
    %576 = vmatpush.msra.mxu0 0.0
    %577 = vmatpush.msra.mxu0 %v77
    %578 = vmatmul.f32.gmra.mxu0 %v557
    %v579 = vpop.f32.mrf.mxu0
    %v580 = vadd.f32 0.0, %v579
    %581 = vmatmul.f32.gmra.mxu0 %v560
    %v582 = vpop.f32.mrf.mxu0
    %v583 = vadd.f32 0.0, %v582
    %584 = vdwg.mxu0
    %v585 = vadd.f32 %v455, %v580
    %v586 = vadd.f32 %v458, %v583
    %587 = vrot.lane.b32.xlu0 %v205, 104
    %v588 = vpop.permute.xlu0 %587
    %589 = vrot.lane.b32.xlu0 %v208, 104
    %v590 = vpop.permute.xlu0 %589
    %591 = vrot.lane.b32.xlu0 %v205, 72
    %v592 = vpop.permute.xlu0 %591
    %593 = vrot.lane.b32.xlu0 %v208, 72
    %v594 = vpop.permute.xlu0 %593
    %v595 = vsel %vm216, %v588, 0
    %v597 = vsel %vm216, %v590, 0
    %v599 = vsel %vm216, %v592, 0
    %v601 = vsel %vm216, %v594, 0
    %603 = vmatpush.xpose.msra.mxu0 0.0
    %604 = vmatpush.xpose.msra.mxu0 0.0
    %605 = vmatpush.xpose.msra.mxu0 0.0
    %606 = vmatpush.xpose.msra.mxu0 0.0
    %607 = vmatpush.xpose.msra.mxu0 0.0
    %608 = vmatpush.xpose.msra.mxu0 0.0
    %609 = vmatpush.xpose.msra.mxu0 0.0
    %610 = vmatpush.xpose.msra.mxu0 0.0
    %611 = vmatpush.xpose.msra.mxu0 0.0
    %612 = vmatpush.xpose.msra.mxu0 0.0
    %613 = vmatpush.xpose.msra.mxu0 0.0
    %614 = vmatpush.xpose.msra.mxu0 0.0
    %615 = vmatpush.xpose.msra.mxu0 0.0
    %616 = vmatpush.xpose.msra.mxu0 0.0
    %617 = vmatpush.xpose.msra.mxu0 %v601
    %618 = vmatpush.xpose.msra.mxu0 %v599
    %619 = vmatmul.f32.gmra.mxu0 %v595
    %v620 = vpop.f32.mrf.mxu0
    %v621 = vadd.f32 %v68, %v620
    %622 = vmatmul.f32.gmra.mxu0 %v597
    %v623 = vpop.f32.mrf.mxu0
    %v624 = vadd.f32 %v69, %v623
    %625 = vdwg.mxu0
    %v626 = vsel %vm248, %v621, -inf
    %627 = vmax.xlane.f32.xlu0 %v626
    %v628 = vpop.xlane.xlu0 %627
    %v629 = vsel %vm248, %v624, -inf
    %630 = vmax.xlane.f32.xlu0 %v629
    %v631 = vpop.xlane.xlu0 %630
    %v632 = vsub.f32 %v621, %v628
    %v633 = vsub.f32 %v624, %v631
    %v634 = vmul.f32 %v632, 1.442695
    %v635 = vpow.pop %v634
    %v636 = vmul.f32 %v633, 1.442695
    %v637 = vpow.pop %v636
    %v638 = vsel %vm248, %v635, 0.0
    %639 = vadd.xlane.f32.xlu0 %v638
    %v640 = vpop.xlane.xlu0 %639
    %v641 = vsel %vm248, %v637, 0.0
    %642 = vadd.xlane.f32.xlu0 %v641
    %v643 = vpop.xlane.xlu0 %642
    %v644 = vrcp.pop %v640
    %v645 = vrcp.pop %v643
    %v646 = vmul.f32 %v635, %v644
    %v647 = vmul.f32 %v637, %v645
    %648 = vrot.lane.b32.xlu0 %v205, 40
    %v649 = vpop.permute.xlu0 %648
    %650 = vrot.lane.b32.xlu0 %v208, 40
    %v651 = vpop.permute.xlu0 %650
    %v655 = vsel %vm248, %v646, 0
    %v658 = vsel %vm248, %v647, 0
    %660 = vmatpush.msra.mxu0 0.0
    %661 = vmatpush.msra.mxu0 0.0
    %662 = vmatpush.msra.mxu0 0.0
    %663 = vmatpush.msra.mxu0 0.0
    %664 = vmatpush.msra.mxu0 0.0
    %665 = vmatpush.msra.mxu0 0.0
    %666 = vmatpush.msra.mxu0 0.0
    %667 = vmatpush.msra.mxu0 0.0
    %668 = vmatpush.msra.mxu0 0.0
    %669 = vmatpush.msra.mxu0 0.0
    %670 = vmatpush.msra.mxu0 0.0
    %671 = vmatpush.msra.mxu0 0.0
    %672 = vmatpush.msra.mxu0 0.0
    %673 = vmatpush.msra.mxu0 0.0
    %674 = vmatpush.msra.mxu0 %v651
    %675 = vmatpush.msra.mxu0 %v649
    %676 = vmatmul.f32.gmra.mxu0 %v655
    %v677 = vpop.f32.mrf.mxu0
    %v678 = vadd.f32 0.0, %v677
    %679 = vmatmul.f32.gmra.mxu0 %v658
    %v680 = vpop.f32.mrf.mxu0
    %v681 = vadd.f32 0.0, %v680
    %682 = vdwg.mxu0
    %v684 = vsel %vm216, %v678, 0
    %v687 = vsel %vm216, %v681, 0
    %689 = vmatpush.msra.mxu0 0.0
    %690 = vmatpush.msra.mxu0 0.0
    %691 = vmatpush.msra.mxu0 0.0
    %692 = vmatpush.msra.mxu0 0.0
    %693 = vmatpush.msra.mxu0 0.0
    %694 = vmatpush.msra.mxu0 0.0
    %695 = vmatpush.msra.mxu0 0.0
    %696 = vmatpush.msra.mxu0 0.0
    %697 = vmatpush.msra.mxu0 0.0
    %698 = vmatpush.msra.mxu0 0.0
    %699 = vmatpush.msra.mxu0 0.0
    %700 = vmatpush.msra.mxu0 0.0
    %701 = vmatpush.msra.mxu0 0.0
    %702 = vmatpush.msra.mxu0 0.0
    %703 = vmatpush.msra.mxu0 0.0
    %704 = vmatpush.msra.mxu0 %v78
    %705 = vmatmul.f32.gmra.mxu0 %v684
    %v706 = vpop.f32.mrf.mxu0
    %v707 = vadd.f32 0.0, %v706
    %708 = vmatmul.f32.gmra.mxu0 %v687
    %v709 = vpop.f32.mrf.mxu0
    %v710 = vadd.f32 0.0, %v709
    %711 = vdwg.mxu0
    %v712 = vadd.f32 %v585, %v707
    %v713 = vadd.f32 %v586, %v710
    %v714 = vadd.f32 %v66, %v712
    %v715 = vadd.f32 %v67, %v713
    %v716 = vperm.slane %v70, 1
    %v717 = vadd.f32 %v714, %v716
    %v718 = vadd.f32 %v715, %v716
    %v719 = vsel %vm83, %v717, 0.0
    %720 = vadd.xlane.f32.xlu0 %v719
    %v721 = vpop.xlane.xlu0 %720
    %v722 = vsel %vm83, %v718, 0.0
    %723 = vadd.xlane.f32.xlu0 %v722
    %v724 = vpop.xlane.xlu0 %723
    %v725 = vmul.f32 %v721, %v96
    %v726 = vmul.f32 %v724, %v96
    %v727 = vsub.f32 %v717, %v725
    %v728 = vsub.f32 %v718, %v726
    %v729 = vmul.f32 %v727, %v727
    %v730 = vmul.f32 %v728, %v728
    %v731 = vsel %vm83, %v729, 0.0
    %732 = vadd.xlane.f32.xlu0 %v731
    %v733 = vpop.xlane.xlu0 %732
    %v734 = vsel %vm83, %v730, 0.0
    %735 = vadd.xlane.f32.xlu0 %v734
    %v736 = vpop.xlane.xlu0 %735
    %v737 = vmul.f32 %v733, %v115
    %v738 = vmul.f32 %v736, %v115
    %v739 = vrsqrt.pop %v737
    %v740 = vmul.f32 %v739, %v737
    %v741 = vmul.f32 %v740, %v739
    %v742 = vmul.f32 0.5, %v741
    %v743 = vsub.f32 1.5, %v742
    %v744 = vmul.f32 %v739, %v743
    %v745 = vmul.f32 %v737, %v744
    %vm746 = vcmp.eq.f32.partialorder %v737, inf
    %v747 = vsel %vm746, %v737, %v745
    %vm748 = vcmp.eq.f32.partialorder %v737, 0.0
    %v749 = vand.u32 %v737, 2147483648
    %v750 = vsel %vm748, %v749, %v747
    %v751 = vrsqrt.pop %v738
    %v752 = vmul.f32 %v751, %v738
    %v753 = vmul.f32 %v752, %v751
    %v754 = vmul.f32 0.5, %v753
    %v755 = vsub.f32 1.5, %v754
    %v756 = vmul.f32 %v751, %v755
    %v757 = vmul.f32 %v738, %v756
    %vm758 = vcmp.eq.f32.partialorder %v738, inf
    %v759 = vsel %vm758, %v738, %v757
    %vm760 = vcmp.eq.f32.partialorder %v738, 0.0
    %v761 = vand.u32 %v738, 2147483648
    %v762 = vsel %vm760, %v761, %v759
    %v763 = vadd.f32 %v750, 1e-06
    %v764 = vadd.f32 %v762, 1e-06
    %v765 = vrcp.pop %v763
    %v766 = vmul.f32 %v763, %v765
    %v767 = vsub.f32 1.0, %v766
    %v768 = vmul.f32 %v765, %v767
    %v769 = vadd.f32 %v765, %v768
    %vm770 = vweird.f32 %v763
    %vm771 = vweird.f32 %v765
    %vm772 = vmor %vm770, %vm771
    %v773 = vsel %vm772, %v765, %v769
    %v774 = vand.u32 2147483647, %v763
    %vm775 = vcmp.eq.f32.partialorder %v774, 8.507059e+37
    %v776 = vand.u32 %v763, 2147483648
    %v777 = vor.u32 1.1754944e-38, %v776
    %v778 = vsel %vm775, %v777, %v773
    %v779 = vrcp.pop %v764
    %v780 = vmul.f32 %v764, %v779
    %v781 = vsub.f32 1.0, %v780
    %v782 = vmul.f32 %v779, %v781
    %v783 = vadd.f32 %v779, %v782
    %vm784 = vweird.f32 %v764
    %vm785 = vweird.f32 %v779
    %vm786 = vmor %vm784, %vm785
    %v787 = vsel %vm786, %v779, %v783
    %v788 = vand.u32 2147483647, %v764
    %vm789 = vcmp.eq.f32.partialorder %v788, 8.507059e+37
    %v790 = vand.u32 %v764, 2147483648
    %v791 = vor.u32 1.1754944e-38, %v790
    %v792 = vsel %vm789, %v791, %v787
    %v793 = vperm.slane %v70, 4
    %v794 = vmul.f32 %v793, %v727
    %v795 = vmul.f32 %v793, %v728
    %v796 = vmul.f32 %v794, %v778
    %v797 = vmul.f32 %v795, %v792
    %v798 = vperm.slane %v70, 5
    %v799 = vadd.f32 %v796, %v798
    %v800 = vadd.f32 %v797, %v798
    %v801 = vperm.slane %v70, 6
    %v803 = vsel %vm83, %v799, 0
    %v806 = vsel %vm83, %v800, 0
    %808 = vmatpush.msra.mxu0 0.0
    %809 = vmatpush.msra.mxu0 0.0
    %810 = vmatpush.msra.mxu0 0.0
    %811 = vmatpush.msra.mxu0 0.0
    %812 = vmatpush.msra.mxu0 0.0
    %813 = vmatpush.msra.mxu0 0.0
    %814 = vmatpush.msra.mxu0 0.0
    %815 = vmatpush.msra.mxu0 0.0
    %816 = vmatpush.msra.mxu0 0.0
    %817 = vmatpush.msra.mxu0 0.0
    %818 = vmatpush.msra.mxu0 0.0
    %819 = vmatpush.msra.mxu0 0.0
    %820 = vmatpush.msra.mxu0 %v82
    %821 = vmatpush.msra.mxu0 %v81
    %822 = vmatpush.msra.mxu0 %v80
    %823 = vmatpush.msra.mxu0 %v79
    %824 = vmatmul.f32.gmra.mxu0 %v803
    %v825 = vpop.f32.mrf.mxu0
    %v826 = vadd.f32 %v801, %v825
    %827 = vmatmul.f32.gmra.mxu0 %v806
    %v828 = vpop.f32.mrf.mxu0
    %v829 = vadd.f32 %v801, %v828
    %830 = vdwg.mxu0
    %v831 = vmax.f32 %v826, 0.0
    %v832 = vmax.f32 %v829, 0.0
    %v833 = vld [vmem:[%s3] sm:$0xff]
    %v834 = vld [vmem:[%s3 + $0x8] sm:$0xff]
    %v835 = vld [vmem:[%s3 + $0x10] sm:$0xff]
    %v836 = vld [vmem:[%s3 + $0x18] sm:$0xff]
    %v837 = vld [vmem:[%s3 + $0x20] sm:$0xff]
    %v838 = vld [vmem:[%s3 + $0x28] sm:$0xff]
    %v839 = vld [vmem:[%s3 + $0x30] sm:$0xff]
    %v840 = vld [vmem:[%s3 + $0x38] sm:$0xff]
    %v841 = vperm.slane %v70, 7
    %vm842 = vcmask 523264
    %v844 = vsel %vm842, %v831, 0
    %v847 = vsel %vm842, %v832, 0
    %849 = vmatpush.msra.mxu0 0.0
    %850 = vmatpush.msra.mxu0 0.0
    %851 = vmatpush.msra.mxu0 0.0
    %852 = vmatpush.msra.mxu0 0.0
    %853 = vmatpush.msra.mxu0 0.0
    %854 = vmatpush.msra.mxu0 0.0
    %855 = vmatpush.msra.mxu0 0.0
    %856 = vmatpush.msra.mxu0 0.0
    %857 = vmatpush.msra.mxu0 %v840
    %858 = vmatpush.msra.mxu0 %v839
    %859 = vmatpush.msra.mxu0 %v838
    %860 = vmatpush.msra.mxu0 %v837
    %861 = vmatpush.msra.mxu0 %v836
    %862 = vmatpush.msra.mxu0 %v835
    %863 = vmatpush.msra.mxu0 %v834
    %864 = vmatpush.msra.mxu0 %v833
    %865 = vmatmul.f32.gmra.mxu0 %v844
    %v866 = vpop.f32.mrf.mxu0
    %v867 = vadd.f32 %v841, %v866
    %868 = vmatmul.f32.gmra.mxu0 %v847
    %v869 = vpop.f32.mrf.mxu0
    %v870 = vadd.f32 %v841, %v869
    %871 = vdwg.mxu0
    %v872 = vadd.f32 %v717, %v867
    %v873 = vadd.f32 %v718, %v870
    %874 = vst.msk [vmem:[#allocation8] sm:$0xff] %vm83, %v872
    %875 = vst.msk [vmem:[#allocation8 + $0x8] sm:$0xff] %vm83, %v873
    // Predicated region
    $region34: #{tpu_custom_call.1} parent=1 // pred_check
      _
    $region35: #{tpu_custom_call.1} parent=1 // pred_check_branch
      %877 = sbr.rel (0) target = $region37
    $region36: #{tpu_custom_call.1} parent=1 // pred_region
      %879 = vsyncadd [#allocation4], 0
      %s880 = sshll.u32 [#allocation8], 4
      %s881 = int_to_ptr.vmem [resolvable:$true] %s880
      %s882 = sshll.u32 %s5, 4
      %s883 = int_to_ptr.hbm [resolvable:$true] %s882
      %888 = dma.vmem_to_hbm [thread:$0]  %s881, 256, %s883, [#allocation4], 128, 128, 8
    $region37: #{tpu_custom_call.1} parent=1 // pred_fallthru
      _
    // Predicated region
    $region38: #{tpu_custom_call.1} parent=1 // pred_check
      _
    $region39: #{tpu_custom_call.1} parent=1 // pred_check_branch
      %890 = sbr.rel (0) target = $region41
    $region40: #{tpu_custom_call.1} parent=1 // pred_region
      %892 = dma.done [#allocation4], 256
    $region41: #{tpu_custom_call.1} parent=1 // pred_fallthru
      _
    %893 = vsyncpa [#allocation3], 1
    %894 = vsyncpa [#allocation6], 1
    %895 = vsyncpa [#allocation4], 1

</llo_original>
